<compile_context>
chip_gen: v7x
topology: tpu7x:2x2x1
jax: 0.10.0
libtpu: 0.0.40
codegen_flags: <defaults>
</compile_context>

<pallas_src>
import jax
import jax.numpy as jnp
from jax import lax
from jax.experimental import pallas as pl
from jax.experimental.pallas import tpu as pltpu

NEG_SLOPE = 0.01   # torch.nn.LeakyReLU default negative_slope
BN_EPS = 1e-5      # torch.nn.BatchNorm1d default eps


def _leaky(v):
    return jnp.where(v > 0, v, NEG_SLOPE * v)


# --------------------------- Pallas kernels -------------------------------- #
def _make_main_kernel(in_c, out_c, L, use_roll):
    """Builds the per-block kernel.  Block = (C, NB*L) lane-dense slab."""
    k1 = 3 * in_c + 1      # c1 weight cols  (taps + bias)
    k2h = 3 * out_c + 1    # c2 h-branch cols (taps + bias)
    k2x = 3 * in_c + 1     # c2 x-branch cols (taps + zero bias col)
    kc = out_c             # choke h-branch cols
    kx = in_c + 1          # choke x-branch cols (+ bias)

    def kernel(x_ref, w_ref, y_ref, ssum_ref, ssq_ref):
        x = x_ref[...].astype(jnp.float32)                 # (in_c, B)
        B = x.shape[1]

        # In-sequence position of each lane; block starts are multiples of L,
        # so a block-local iota is globally correct.
        pos = lax.broadcasted_iota(jnp.int32, (1, B), 1) % L
        not_first = (pos != 0).astype(jnp.float32)         # zero the l==0 tap
        not_last = (pos != L - 1).astype(jnp.float32)      # zero the l==L-1 tap
        ones = jnp.ones((1, B), jnp.float32)

        if use_roll:
            def shift_r(v):   # v[:, l-1] (garbage at batch starts -> masked)
                return pltpu.roll(v, shift=1, axis=1)

            def shift_l(v):   # v[:, l+1] (garbage at batch ends -> masked)
                return pltpu.roll(v, shift=v.shape[1] - 1, axis=1)
        else:
            # Fallback for lane blocks that are not 128-aligned.
            def shift_r(v):
                z = jnp.zeros((v.shape[0], 1), jnp.float32)
                return jnp.concatenate([z, v[:, :-1]], axis=1)

            def shift_l(v):
                z = jnp.zeros((v.shape[0], 1), jnp.float32)
                return jnp.concatenate([v[:, 1:], z], axis=1)

        def taps(v):
            # [v(l-1); v(l); v(l+1); 1] stacked on sublanes -> one matmul per
            # k=3 conv against a (out_c, 3C+1) weight (bias folded in).
            return jnp.concatenate(
                [shift_r(v) * not_first, v, shift_l(v) * not_last, ones],
                axis=0)

        w = w_ref[...]                                     # (5, out_c, Kmax)
        w1 = w[0, :, :k1]
        w2h = w[1, :, :k2h]
        w2x = w[2, :, :k2x]
        wch = w[3, :, :kc]
        wcx = w[4, :, :kx]

        # c1 + LeakyReLU
        x3 = taps(x)                                       # (3*in_c+1, B)
        h1 = _leaky(jnp.dot(w1, x3, preferred_element_type=jnp.float32))

        # c2 on cat([h1, x]) via split weights (no channel concat) + LeakyReLU
        h2 = _leaky(jnp.dot(w2h, taps(h1), preferred_element_type=jnp.float32)
                    + jnp.dot(w2x, x3, preferred_element_type=jnp.float32))

        # choke (k=1) on cat([h2, x]) via split weights + LeakyReLU
        y = _leaky(jnp.dot(wch, h2, preferred_element_type=jnp.float32)
                   + jnp.dot(wcx, jnp.concatenate([x, ones], axis=0),
                             preferred_element_type=jnp.float32))

        y_ref[...] = y.astype(y_ref.dtype)                 # lane-dense store

        # Single-pass partial BatchNorm statistics (per block, per channel).
        ssum_ref[...] = jnp.sum(y, axis=1, keepdims=True)[None]       # (1,out_c,1)
        ssq_ref[...] = jnp.sum(y * y, axis=1, keepdims=True)[None]    # (1,out_c,1)

    return kernel


def bn_apply_kernel(y_ref, scale_ref, shift_ref, o_ref):
    """Lane-dense elementwise BN apply: o = y * scale + shift (in place)."""
    o_ref[...] = y_ref[...] * scale_ref[...] + shift_ref[...]


# ------------------------------ wrapper ------------------------------------ #
def _prep_params(params):
    """Fold biases into tap-stacked weights and pack all mats into one array."""
    w1, b1, w2, b2, wc, bc, gamma, beta = params
    out_c = w1.shape[0]

    def stack_taps(w):  # (D, C, 3) -> (D, 3C) ordered [tap l-1 | tap l | tap l+1]
        return jnp.concatenate([w[:, :, 0], w[:, :, 1], w[:, :, 2]], axis=1)

    w1p = jnp.concatenate([stack_taps(w1), b1[:, None]], axis=1)
    w2hp = jnp.concatenate([stack_taps(w2[:, :out_c, :]), b2[:, None]], axis=1)
    w2xp = jnp.concatenate([stack_taps(w2[:, out_c:, :]),
                            jnp.zeros((out_c, 1), w2.dtype)], axis=1)
    wch = wc[:, :out_c]
    wcxp = jnp.concatenate([wc[:, out_c:], bc[:, None]], axis=1)

    mats = [w1p, w2hp, w2xp, wch, wcxp]
    kmax = max(int(m.shape[1]) for m in mats)
    W = jnp.stack([jnp.pad(m, ((0, 0), (0, kmax - m.shape[1]))) for m in mats])
    return W.astype(jnp.float32), gamma, beta


def _pick_block_batches(n, l, per_batch_bytes, target_bytes=2 << 20):
    """Largest divisor nb of n whose lane block nb*l is 128-aligned, fits the
    ~2 MiB budget, and keeps >= 2 grid steps (v7x megacore).  Falls back to a
    single full-extent block (always a legal BlockSpec)."""
    best = n
    for nb in range(1, n):
        if n % nb:
            continue
        if (nb * l) % 128:
            continue
        if nb * per_batch_bytes > target_bytes:
            continue
        if n // nb < 2:
            continue
        best = nb
    return best


def dblock_forward(ip, params):
    """ip: (N, in_c, L) NCL, like PyTorch. Returns (N, out_c, L) NCL."""
    N, in_c, L = ip.shape
    W, gamma, beta = _prep_params(params)
    out_c = W.shape[1]

    # Channels-major flattened layout (layout plumbing done once by XLA);
    # lanes = N*L so every kernel store/matmul is lane-dense.
    xt = jnp.transpose(ip, (1, 0, 2)).reshape(in_c, N * L).astype(jnp.float32)

    # Rough live f32 bytes per batch inside the kernel (x, taps, h1, h2, y, ...).
    per_batch_bytes = (4 * in_c + 6 * out_c + 5) * L * 4
    nb = _pick_block_batches(N, L, per_batch_bytes)
    nblocks = N // nb
    B = nb * L

    main_kernel = _make_main_kernel(in_c, out_c, L, use_roll=(B % 128 == 0))

    yt, ssum, ssq = pl.pallas_call(
        main_kernel,
        grid=(nblocks,),
        in_specs=[
            pl.BlockSpec((in_c, B), lambda i: (0, i)),
            pl.BlockSpec(W.shape, lambda i: (0, 0, 0)),
        ],
        out_specs=(
            pl.BlockSpec((out_c, B), lambda i: (0, i)),
            pl.BlockSpec((1, out_c, 1), lambda i: (i, 0, 0)),
            pl.BlockSpec((1, out_c, 1), lambda i: (i, 0, 0)),
        ),
        out_shape=(
            jax.ShapeDtypeStruct((out_c, N * L), jnp.float32),
            jax.ShapeDtypeStruct((nblocks, out_c, 1), jnp.float32),
            jax.ShapeDtypeStruct((nblocks, out_c, 1), jnp.float32),
        ),
        compiler_params=pltpu.CompilerParams(
            dimension_semantics=("parallel",)),
    )(xt, W)

    # Tiny cross-block reduction + scalar math (glue): per-channel scale/shift.
    # Single-pass var = E[y^2]-E[y]^2 (clamped); fine for forward inference.
    cnt = jnp.float32(N * L)
    mean = jnp.sum(ssum[:, :, 0], axis=0) / cnt                  # (out_c,)
    var = jnp.maximum(jnp.sum(ssq[:, :, 0], axis=0) / cnt - mean * mean, 0.0)
    scale = gamma * lax.rsqrt(var + BN_EPS)                      # (out_c,)
    shift = beta - mean * scale                                  # (out_c,)

    out_t = pl.pallas_call(
        bn_apply_kernel,
        grid=(nblocks,),
        in_specs=[
            pl.BlockSpec((out_c, B), lambda i: (0, i)),
            pl.BlockSpec((out_c, 1), lambda i: (0, 0)),
            pl.BlockSpec((out_c, 1), lambda i: (0, 0)),
        ],
        out_specs=pl.BlockSpec((out_c, B), lambda i: (0, i)),
        out_shape=jax.ShapeDtypeStruct((out_c, N * L), jnp.float32),
        input_output_aliases={0: 0},          # write BN result in place over y
        compiler_params=pltpu.CompilerParams(
            dimension_semantics=("parallel",)),
    )(yt, scale[:, None], shift[:, None])

    # Back to PyTorch NCL.
    return jnp.transpose(out_t.reshape(out_c, N, L), (1, 0, 2))


def init_params(key, in_c, out_c):
    """Parameters in PyTorch Conv1d/BatchNorm1d layouts."""
    ks = jax.random.split(key, 8)
    w1 = 0.1 * jax.random.normal(ks[0], (out_c, in_c, 3), jnp.float32)
    b1 = 0.1 * jax.random.normal(ks[1], (out_c,), jnp.float32)
    w2 = 0.1 * jax.random.normal(ks[2], (out_c, out_c + in_c, 3), jnp.float32)
    b2 = 0.1 * jax.random.normal(ks[3], (out_c,), jnp.float32)
    wc = 0.1 * jax.random.normal(ks[4], (out_c, out_c + in_c), jnp.float32)
    bc = 0.1 * jax.random.normal(ks[5], (out_c,), jnp.float32)
    gamma = 1.0 + 0.05 * jax.random.normal(ks[6], (out_c,), jnp.float32)
    beta = 0.05 * jax.random.normal(ks[7], (out_c,), jnp.float32)
    return (w1, b1, w2, b2, wc, bc, gamma, beta)


# ------------------------- pure-JAX reference ------------------------------ #
def _ref_conv1d_k3(x, w, b):
    # x: (N, C, L); w: (D, C, 3); b: (D,); 'same' (padding=1) conv.
    N, C, L = x.shape
    xp = jnp.pad(x, ((0, 0), (0, 0), (1, 1)))
    y = sum(jnp.einsum('ncl,dc->ndl', xp[:, :, t:t + L], w[:, :, t])
            for t in range(3))
    return y + b[None, :, None]


def dblock_ref(ip, params):
    w1, b1, w2, b2, wc, bc, gamma, beta = params
    x = ip.astype(jnp.float32)
    h1 = _leaky(_ref_conv1d_k3(x, w1, b1))
    x1 = jnp.concatenate([h1, x], axis=1)                 # Dropout(0.0) == id
    h2 = _leaky(_ref_conv1d_k3(x1, w2, b2))
    x2 = jnp.concatenate([h2, x], axis=1)
    y = _leaky(jnp.einsum('ncl,dc->ndl', x2, wc) + bc[None, :, None])
    mean = jnp.mean(y, axis=(0, 2), keepdims=True)
    var = jnp.mean((y - mean) ** 2, axis=(0, 2), keepdims=True)
    y = ((y - mean) * lax.rsqrt(var + BN_EPS) * gamma[None, :, None]
         + beta[None, :, None])
    return y


if __name__ == "__main__":
    key = jax.random.PRNGKey(0)
    k_in, k_par = jax.random.split(key)

    N, in_c, out_c, L = 2, 4, 8, 16
    ip = jax.random.normal(k_in, (N, in_c, L), jnp.float32)   # PyTorch NCL input
    params = init_params(k_par, in_c, out_c)

    fwd = jax.jit(dblock_forward)
    out = jax.block_until_ready(fwd(ip, params))
    ref = jax.block_until_ready(dblock_ref(ip, params))

    assert out.shape == (N, out_c, L), out.shape
    max_err = float(jnp.max(jnp.abs(out - ref)))
    assert jnp.allclose(out, ref, rtol=1e-4, atol=1e-4), max_err
    print("KERNEL_OK")
</pallas_src>

<mosaic_0001>
module attributes {stable_mosaic.version = 11 : i64} {
  func.func @bn_apply_kernel(%arg0: i32, %arg1: memref<8x32xf32, #tpu.memory_space<vmem>>, %arg2: memref<8x1xf32, #tpu.memory_space<vmem>>, %arg3: memref<8x1xf32, #tpu.memory_space<vmem>>, %arg4: memref<8x32xf32, #tpu.memory_space<vmem>>) attributes {dimension_semantics = [#tpu.dimension_semantics<parallel>], iteration_bounds = array<i64: 1>, scalar_prefetch = 0 : i64, scratch_operands = 0 : i64, tpu.core_type = #tpu.core_type<tc>, window_params = [{transform_indices = @transform_0, window_bounds = array<i64: 8, 32>}, {pipeline_mode = #tpu.pipeline_mode<synchronous>, transform_indices = @transform_1, window_bounds = array<i64: 8, 1>}, {pipeline_mode = #tpu.pipeline_mode<synchronous>, transform_indices = @transform_2, window_bounds = array<i64: 8, 1>}, {transform_indices = @transform_3, window_bounds = array<i64: 8, 32>}]} {
    %c0 = arith.constant 0 : index
    %c0_0 = arith.constant 0 : index
    %0 = vector.load %arg1[%c0, %c0_0] : memref<8x32xf32, #tpu.memory_space<vmem>>, vector<8x32xf32>
    %c0_1 = arith.constant 0 : index
    %c0_2 = arith.constant 0 : index
    %1 = vector.load %arg2[%c0_1, %c0_2] : memref<8x1xf32, #tpu.memory_space<vmem>>, vector<8x1xf32>
    %2 = vector.broadcast %1 : vector<8x1xf32> to vector<8x32xf32>
    %3 = arith.mulf %0, %2 : vector<8x32xf32>
    %c0_3 = arith.constant 0 : index
    %c0_4 = arith.constant 0 : index
    %4 = vector.load %arg3[%c0_3, %c0_4] : memref<8x1xf32, #tpu.memory_space<vmem>>, vector<8x1xf32>
    %5 = vector.broadcast %4 : vector<8x1xf32> to vector<8x32xf32>
    %6 = arith.addf %3, %5 : vector<8x32xf32>
    %c0_5 = arith.constant 0 : index
    %c0_6 = arith.constant 0 : index
    %7 = vector.load %arg4[%c0_5, %c0_6] : memref<8x32xf32, #tpu.memory_space<vmem>>, vector<8x32xf32>
    tpu.vector_store %arg4[%c0_5, %c0_6], %6 {strides = array<i32>} : memref<8x32xf32, #tpu.memory_space<vmem>>, vector<8x32xf32>,
    return
  }
  func.func @transform_0(%arg0: i32) -> (i32, i32) {
    %c0_i32 = arith.constant 0 : i32
    %c0_i32_0 = arith.constant 0 : i32
    return %c0_i32, %arg0 : i32, i32
  }
  func.func @transform_1(%arg0: i32) -> (i32, i32) {
    %c0_i32 = arith.constant 0 : i32
    %c0_i32_0 = arith.constant 0 : i32
    %c0_i32_1 = arith.constant 0 : i32
    return %c0_i32, %c0_i32_0 : i32, i32
  }
  func.func @transform_2(%arg0: i32) -> (i32, i32) {
    %c0_i32 = arith.constant 0 : i32
    %c0_i32_0 = arith.constant 0 : i32
    %c0_i32_1 = arith.constant 0 : i32
    return %c0_i32, %c0_i32_0 : i32, i32
  }
  func.func @transform_3(%arg0: i32) -> (i32, i32) {
    %c0_i32 = arith.constant 0 : i32
    %c0_i32_0 = arith.constant 0 : i32
    return %c0_i32, %arg0 : i32, i32
  }
}

module attributes {stable_mosaic.version = 11 : i64} {
  func.func @kernel(%arg0: i32, %arg1: memref<4x32xf32, #tpu.memory_space<vmem>>, %arg2: memref<5x8x25xf32, #tpu.memory_space<vmem>>, %arg3: memref<8x32xf32, #tpu.memory_space<vmem>>, %arg4: memref<1x8x1xf32, #tpu.memory_space<vmem>>, %arg5: memref<1x8x1xf32, #tpu.memory_space<vmem>>) attributes {dimension_semantics = [#tpu.dimension_semantics<parallel>], iteration_bounds = array<i64: 1>, scalar_prefetch = 0 : i64, scratch_operands = 0 : i64, tpu.core_type = #tpu.core_type<tc>, window_params = [{transform_indices = @transform_0, window_bounds = array<i64: 4, 32>}, {pipeline_mode = #tpu.pipeline_mode<synchronous>, transform_indices = @transform_1, window_bounds = array<i64: 5, 8, 25>}, {transform_indices = @transform_2, window_bounds = array<i64: 8, 32>}, {transform_indices = @transform_3, window_bounds = array<i64: 1, 8, 1>}, {transform_indices = @transform_4, window_bounds = array<i64: 1, 8, 1>}]} {
    %c0 = arith.constant 0 : index
    %c0_0 = arith.constant 0 : index
    %0 = vector.load %arg1[%c0, %c0_0] : memref<4x32xf32, #tpu.memory_space<vmem>>, vector<4x32xf32>
    %1 = tpu.iota {dimensions = array<i32: 1>} : vector<1x32xi32>
    %c16_i32 = arith.constant 16 : i32
    %c0_i32 = arith.constant 0 : i32
    %2 = arith.cmpi eq, %c16_i32, %c0_i32 : i32
    %c1_i32 = arith.constant 1 : i32
    %3 = arith.select %2, %c1_i32, %c16_i32 : i32
    %4 = vector.broadcast %3 : i32 to vector<1x32xi32>
    %5 = arith.remsi %1, %4 : vector<1x32xi32>
    %c0_i32_1 = arith.constant 0 : i32
    %6 = vector.broadcast %c0_i32_1 : i32 to vector<1x32xi32>
    %7 = arith.cmpi ne, %5, %6 : vector<1x32xi32>
    %c0_i32_2 = arith.constant 0 : i32
    %8 = vector.broadcast %c0_i32_2 : i32 to vector<1x32xi32>
    %9 = arith.cmpi slt, %5, %8 : vector<1x32xi32>
    %c0_i32_3 = arith.constant 0 : i32
    %10 = arith.cmpi slt, %3, %c0_i32_3 : i32
    %11 = vector.broadcast %10 : i1 to vector<1x32xi1>
    %12 = vector.broadcast %11 : vector<1x32xi1> to vector<1x32xi1>
    %13 = arith.xori %9, %12 : vector<1x32xi1>
    %14 = arith.andi %13, %7 : vector<1x32xi1>
    %15 = vector.broadcast %3 : i32 to vector<1x32xi32>
    %16 = arith.addi %5, %15 : vector<1x32xi32>
    %17 = arith.select %14, %16, %5 : vector<1x32xi1>, vector<1x32xi32>
    %c0_i32_4 = arith.constant 0 : i32
    %18 = vector.broadcast %c0_i32_4 : i32 to vector<1x32xi32>
    %19 = arith.cmpi ne, %17, %18 : vector<1x32xi32>
    %20 = arith.extui %19 : vector<1x32xi1> to vector<1x32xi32>
    %21 = arith.sitofp %20 : vector<1x32xi32> to vector<1x32xf32>
    %c15_i32 = arith.constant 15 : i32
    %22 = vector.broadcast %c15_i32 : i32 to vector<1x32xi32>
    %23 = arith.cmpi ne, %17, %22 : vector<1x32xi32>
    %24 = arith.extui %23 : vector<1x32xi1> to vector<1x32xi32>
    %25 = arith.sitofp %24 : vector<1x32xi32> to vector<1x32xf32>
    %cst = arith.constant 1.000000e+00 : f32
    %26 = vector.broadcast %cst : f32 to vector<1x32xf32>
    %c0_5 = arith.constant 0 : index
    %c0_6 = arith.constant 0 : index
    %c0_7 = arith.constant 0 : index
    %27 = vector.load %arg2[%c0_5, %c0_6, %c0_7] : memref<5x8x25xf32, #tpu.memory_space<vmem>>, vector<5x8x25xf32>
    %28 = vector.extract_strided_slice %27 {offsets = [0, 0, 0], sizes = [1, 8, 13], strides = [1, 1, 1]} : vector<5x8x25xf32> to vector<1x8x13xf32>
    %29 = vector.shape_cast %28 : vector<1x8x13xf32> to vector<8x13xf32>
    %30 = vector.extract_strided_slice %27 {offsets = [1, 0, 0], sizes = [1, 8, 25], strides = [1, 1, 1]} : vector<5x8x25xf32> to vector<1x8x25xf32>
    %31 = vector.shape_cast %30 : vector<1x8x25xf32> to vector<8x25xf32>
    %32 = vector.extract_strided_slice %27 {offsets = [2, 0, 0], sizes = [1, 8, 13], strides = [1, 1, 1]} : vector<5x8x25xf32> to vector<1x8x13xf32>
    %33 = vector.shape_cast %32 : vector<1x8x13xf32> to vector<8x13xf32>
    %34 = vector.extract_strided_slice %27 {offsets = [3, 0, 0], sizes = [1, 8, 8], strides = [1, 1, 1]} : vector<5x8x25xf32> to vector<1x8x8xf32>
    %35 = vector.shape_cast %34 : vector<1x8x8xf32> to vector<8x8xf32>
    %36 = vector.extract_strided_slice %27 {offsets = [4, 0, 0], sizes = [1, 8, 5], strides = [1, 1, 1]} : vector<5x8x25xf32> to vector<1x8x5xf32>
    %37 = vector.shape_cast %36 : vector<1x8x5xf32> to vector<8x5xf32>
    %cst_8 = arith.constant 0.000000e+00 : f32
    %38 = vector.broadcast %cst_8 : f32 to vector<4x1xf32>
    %39 = vector.extract_strided_slice %0 {offsets = [0, 0], sizes = [4, 31], strides = [1, 1]} : vector<4x32xf32> to vector<4x31xf32>
    %40 = tpu.concatenate %38, %39 in 1 : vector<4x1xf32>, vector<4x31xf32> -> vector<4x32xf32>
    %41 = vector.broadcast %21 : vector<1x32xf32> to vector<4x32xf32>
    %42 = arith.mulf %40, %41 : vector<4x32xf32>
    %cst_9 = arith.constant 0.000000e+00 : f32
    %43 = vector.broadcast %cst_9 : f32 to vector<4x1xf32>
    %44 = vector.extract_strided_slice %0 {offsets = [0, 1], sizes = [4, 31], strides = [1, 1]} : vector<4x32xf32> to vector<4x31xf32>
    %45 = tpu.concatenate %44, %43 in 1 : vector<4x31xf32>, vector<4x1xf32> -> vector<4x32xf32>
    %46 = vector.broadcast %25 : vector<1x32xf32> to vector<4x32xf32>
    %47 = arith.mulf %45, %46 : vector<4x32xf32>
    %48 = tpu.concatenate %42, %0, %47, %26 in 0 : vector<4x32xf32>, vector<4x32xf32>, vector<4x32xf32>, vector<1x32xf32> -> vector<13x32xf32>
    %cst_10 = arith.constant dense<0.000000e+00> : vector<8x32xf32>
    %49 = tpu.matmul %29, %48, %cst_10 {dimension_numbers = #tpu.dot_dimension_numbers<[1], [0], [0], [1], [0, 0, 1, 1], [], []>} : vector<8x13xf32>, vector<13x32xf32>, vector<8x32xf32> -> vector<8x32xf32>
    %cst_11 = arith.constant 0.000000e+00 : f32
    %50 = vector.broadcast %cst_11 : f32 to vector<8x32xf32>
    %51 = arith.cmpf ogt, %49, %50 : vector<8x32xf32>
    %cst_12 = arith.constant 0.00999999977 : f32
    %52 = vector.broadcast %cst_12 : f32 to vector<8x32xf32>
    %53 = arith.mulf %52, %49 : vector<8x32xf32>
    %54 = arith.select %51, %49, %53 : vector<8x32xi1>, vector<8x32xf32>
    %cst_13 = arith.constant 0.000000e+00 : f32
    %55 = vector.broadcast %cst_13 : f32 to vector<8x1xf32>
    %56 = vector.extract_strided_slice %54 {offsets = [0, 0], sizes = [8, 31], strides = [1, 1]} : vector<8x32xf32> to vector<8x31xf32>
    %57 = tpu.concatenate %55, %56 in 1 : vector<8x1xf32>, vector<8x31xf32> -> vector<8x32xf32>
    %58 = vector.broadcast %21 : vector<1x32xf32> to vector<8x32xf32>
    %59 = arith.mulf %57, %58 : vector<8x32xf32>
    %cst_14 = arith.constant 0.000000e+00 : f32
    %60 = vector.broadcast %cst_14 : f32 to vector<8x1xf32>
    %61 = vector.extract_strided_slice %54 {offsets = [0, 1], sizes = [8, 31], strides = [1, 1]} : vector<8x32xf32> to vector<8x31xf32>
    %62 = tpu.concatenate %61, %60 in 1 : vector<8x31xf32>, vector<8x1xf32> -> vector<8x32xf32>
    %63 = vector.broadcast %25 : vector<1x32xf32> to vector<8x32xf32>
    %64 = arith.mulf %62, %63 : vector<8x32xf32>
    %65 = tpu.concatenate %59, %54, %64, %26 in 0 : vector<8x32xf32>, vector<8x32xf32>, vector<8x32xf32>, vector<1x32xf32> -> vector<25x32xf32>
    %cst_15 = arith.constant dense<0.000000e+00> : vector<8x32xf32>
    %66 = tpu.matmul %31, %65, %cst_15 {dimension_numbers = #tpu.dot_dimension_numbers<[1], [0], [0], [1], [0, 0, 1, 1], [], []>} : vector<8x25xf32>, vector<25x32xf32>, vector<8x32xf32> -> vector<8x32xf32>
    %cst_16 = arith.constant dense<0.000000e+00> : vector<8x32xf32>
    %67 = tpu.matmul %33, %48, %cst_16 {dimension_numbers = #tpu.dot_dimension_numbers<[1], [0], [0], [1], [0, 0, 1, 1], [], []>} : vector<8x13xf32>, vector<13x32xf32>, vector<8x32xf32> -> vector<8x32xf32>
    %68 = arith.addf %66, %67 : vector<8x32xf32>
    %cst_17 = arith.constant 0.000000e+00 : f32
    %69 = vector.broadcast %cst_17 : f32 to vector<8x32xf32>
    %70 = arith.cmpf ogt, %68, %69 : vector<8x32xf32>
    %cst_18 = arith.constant 0.00999999977 : f32
    %71 = vector.broadcast %cst_18 : f32 to vector<8x32xf32>
    %72 = arith.mulf %71, %68 : vector<8x32xf32>
    %73 = arith.select %70, %68, %72 : vector<8x32xi1>, vector<8x32xf32>
    %cst_19 = arith.constant dense<0.000000e+00> : vector<8x32xf32>
    %74 = tpu.matmul %35, %73, %cst_19 {dimension_numbers = #tpu.dot_dimension_numbers<[1], [0], [0], [1], [0, 0, 1, 1], [], []>} : vector<8x8xf32>, vector<8x32xf32>, vector<8x32xf32> -> vector<8x32xf32>
    %75 = tpu.concatenate %0, %26 in 0 : vector<4x32xf32>, vector<1x32xf32> -> vector<5x32xf32>
    %cst_20 = arith.constant dense<0.000000e+00> : vector<8x32xf32>
    %76 = tpu.matmul %37, %75, %cst_20 {dimension_numbers = #tpu.dot_dimension_numbers<[1], [0], [0], [1], [0, 0, 1, 1], [], []>} : vector<8x5xf32>, vector<5x32xf32>, vector<8x32xf32> -> vector<8x32xf32>
    %77 = arith.addf %74, %76 : vector<8x32xf32>
    %cst_21 = arith.constant 0.000000e+00 : f32
    %78 = vector.broadcast %cst_21 : f32 to vector<8x32xf32>
    %79 = arith.cmpf ogt, %77, %78 : vector<8x32xf32>
    %cst_22 = arith.constant 0.00999999977 : f32
    %80 = vector.broadcast %cst_22 : f32 to vector<8x32xf32>
    %81 = arith.mulf %80, %77 : vector<8x32xf32>
    %82 = arith.select %79, %77, %81 : vector<8x32xi1>, vector<8x32xf32>
    %c0_23 = arith.constant 0 : index
    %c0_24 = arith.constant 0 : index
    %83 = vector.load %arg3[%c0_23, %c0_24] : memref<8x32xf32, #tpu.memory_space<vmem>>, vector<8x32xf32>
    tpu.vector_store %arg3[%c0_23, %c0_24], %82 {strides = array<i32>} : memref<8x32xf32, #tpu.memory_space<vmem>>, vector<8x32xf32>,
    %cst_25 = arith.constant dense<0.000000e+00> : vector<8xf32>
    %84 = vector.multi_reduction <add>, %82, %cst_25 [1] : vector<8x32xf32> to vector<8xf32>
    %85 = vector.shape_cast %84 : vector<8xf32> to vector<8x1xf32>
    %86 = vector.shape_cast %85 : vector<8x1xf32> to vector<1x8x1xf32>
    %c0_26 = arith.constant 0 : index
    %c0_27 = arith.constant 0 : index
    %c0_28 = arith.constant 0 : index
    %87 = vector.load %arg4[%c0_26, %c0_27, %c0_28] : memref<1x8x1xf32, #tpu.memory_space<vmem>>, vector<1x8x1xf32>
    tpu.vector_store %arg4[%c0_26, %c0_27, %c0_28], %86 {strides = array<i32>} : memref<1x8x1xf32, #tpu.memory_space<vmem>>, vector<1x8x1xf32>,
    %88 = arith.mulf %82, %82 : vector<8x32xf32>
    %cst_29 = arith.constant dense<0.000000e+00> : vector<8xf32>
    %89 = vector.multi_reduction <add>, %88, %cst_29 [1] : vector<8x32xf32> to vector<8xf32>
    %90 = vector.shape_cast %89 : vector<8xf32> to vector<8x1xf32>
    %91 = vector.shape_cast %90 : vector<8x1xf32> to vector<1x8x1xf32>
    %c0_30 = arith.constant 0 : index
    %c0_31 = arith.constant 0 : index
    %c0_32 = arith.constant 0 : index
    %92 = vector.load %arg5[%c0_30, %c0_31, %c0_32] : memref<1x8x1xf32, #tpu.memory_space<vmem>>, vector<1x8x1xf32>
    tpu.vector_store %arg5[%c0_30, %c0_31, %c0_32], %91 {strides = array<i32>} : memref<1x8x1xf32, #tpu.memory_space<vmem>>, vector<1x8x1xf32>,
    return
  }
  func.func @transform_0(%arg0: i32) -> (i32, i32) {
    %c0_i32 = arith.constant 0 : i32
    %c0_i32_0 = arith.constant 0 : i32
    return %c0_i32, %arg0 : i32, i32
  }
  func.func @transform_1(%arg0: i32) -> (i32, i32, i32) {
    %c0_i32 = arith.constant 0 : i32
    %c0_i32_0 = arith.constant 0 : i32
    %c0_i32_1 = arith.constant 0 : i32
    %c0_i32_2 = arith.constant 0 : i32
    return %c0_i32, %c0_i32_0, %c0_i32_1 : i32, i32, i32
  }
  func.func @transform_2(%arg0: i32) -> (i32, i32) {
    %c0_i32 = arith.constant 0 : i32
    %c0_i32_0 = arith.constant 0 : i32
    return %c0_i32, %arg0 : i32, i32
  }
  func.func @transform_3(%arg0: i32) -> (i32, i32, i32) {
    %c0_i32 = arith.constant 0 : i32
    %c0_i32_0 = arith.constant 0 : i32
    %c0_i32_1 = arith.constant 0 : i32
    return %arg0, %c0_i32, %c0_i32_0 : i32, i32, i32
  }
  func.func @transform_4(%arg0: i32) -> (i32, i32, i32) {
    %c0_i32 = arith.constant 0 : i32
    %c0_i32_0 = arith.constant 0 : i32
    %c0_i32_1 = arith.constant 0 : i32
    return %arg0, %c0_i32, %c0_i32_0 : i32, i32, i32
  }
}

</mosaic_0001>

<llo_original>
// kernel: dblock_forward.3
$region0: #{dblock_forward.3}
  #allocation0 [shape = 'u32[]', space=smem, size = 0x4, offset = 0x4, fixed_abs, tag = 'smem constant byte address 0x4 - core index']
  #allocation1 [shape = 'u32[144,128]{1,0:T(1,128)}', space=vmem, size = 0x12000, scoped, tag = 'internal scratch']
  %s0 = inlined_call_operand.vmem [shape: f32[8,32], index: 0, kind: input, shape index: {}, may-alias: {0,3}]
  %s1 = inlined_call_operand.vmem [shape: f32[8,1], index: 1, kind: input, shape index: {}]
  %s2 = inlined_call_operand.vmem [shape: f32[8,1], index: 2, kind: input, shape index: {}]
  %s3 = inlined_call_operand.vmem [shape: f32[8,32], index: 3, kind: output, shape index: {}, may-alias: {0,3}]
  %s4 = sld [smem:[#allocation0]]
  $region22: #{dblock_forward.3} parent=0
    _
  %s6 = ssub.s32 1, %s4
  %s7 = scalar_select 0, %s6, %s4
  // Predicated region
  $region2: #{dblock_forward.3} parent=0 // pred_check
    _
  $region3: #{dblock_forward.3} parent=0 // pred_check_branch
    %9 = sbr.rel (0) target = $region5
  $region4: #{dblock_forward.3} parent=0 // pred_region
    _
  $region5: #{dblock_forward.3} parent=0 // pred_fallthru
    _
  // Predicated region
  $region6: #{dblock_forward.3} parent=0 // pred_check
    _
  $region7: #{dblock_forward.3} parent=0 // pred_check_branch
    %11 = sbr.rel (0) target = $region9
  $region8: #{dblock_forward.3} parent=0 // pred_region
    _
  $region9: #{dblock_forward.3} parent=0 // pred_fallthru
    _
  // Predicated region
  $region10: #{dblock_forward.3} parent=0 // pred_check
    _
  $region11: #{dblock_forward.3} parent=0 // pred_check_branch
    %13 = sbr.rel (0) target = $region13
  $region12: #{dblock_forward.3} parent=0 // pred_region
    _
  $region13: #{dblock_forward.3} parent=0 // pred_fallthru
    _
  %v14 = vld [vmem:[%s0] sm:$0xff]
  %v15 = vld [vmem:[%s1] sm:$0xff]
  %17 = vset.pattern.permute.xlu0 0
  %18 = vperm.xlu0 %17, %v15
  %v19 = vpop.permute.xlu0 %18
  %v21 = vmul.f32 %v14, %v19
  %v22 = vld [vmem:[%s2] sm:$0xff]
  %24 = vset.pattern.permute.xlu0 0
  %25 = vperm.xlu0 %24, %v22
  %v26 = vpop.permute.xlu0 %25
  %v28 = vadd.f32 %v21, %v26
  %vm29 = vcmask 261120
  %30 = vst.msk [vmem:[%s3] sm:$0xff] %vm29, %v28
  // Predicated region
  $region14: #{dblock_forward.3} parent=0 // pred_check
    _
  $region15: #{dblock_forward.3} parent=0 // pred_check_branch
    %32 = sbr.rel (0) target = $region17
  $region16: #{dblock_forward.3} parent=0 // pred_region
    _
  $region17: #{dblock_forward.3} parent=0 // pred_fallthru
    _
  // Predicated region
  $region18: #{dblock_forward.3} parent=0 // pred_check
    _
  $region19: #{dblock_forward.3} parent=0 // pred_check_branch
    %34 = sbr.rel (0) target = $region21
  $region20: #{dblock_forward.3} parent=0 // pred_region
    _
  $region21: #{dblock_forward.3} parent=0 // pred_fallthru
    _

// kernel: dblock_forward.2
$region0: #{dblock_forward.2}
  #allocation0 [shape = 'u32[]', space=smem, size = 0x4, offset = 0x4, fixed_abs, tag = 'smem constant byte address 0x4 - core index']
  #allocation1 [shape = 'u32[144,128]{1,0:T(1,128)}', space=vmem, size = 0x12000, scoped, tag = 'internal scratch']
  %s0 = inlined_call_operand.vmem [shape: f32[4,32], index: 0, kind: input, shape index: {}]
  %s1 = inlined_call_operand.vmem [shape: f32[5,8,25], index: 1, kind: input, shape index: {}]
  %s2 = inlined_call_operand.vmem [shape: f32[8,32], index: 2, kind: output, shape index: {0}]
  %s3 = inlined_call_operand.vmem [shape: f32[1,8,1], index: 3, kind: output, shape index: {1}]
  %s4 = inlined_call_operand.vmem [shape: f32[1,8,1], index: 4, kind: output, shape index: {2}]
  %5 = xla_tuple %s2, %s3, %s4
  %s6 = sld [smem:[#allocation0]]
  $region34: #{dblock_forward.2} parent=0
    _
  %s8 = ssub.s32 1, %s6
  %s9 = scalar_select 0, %s8, %s6
  // Predicated region
  $region2: #{dblock_forward.2} parent=0 // pred_check
    _
  $region3: #{dblock_forward.2} parent=0 // pred_check_branch
    %11 = sbr.rel (0) target = $region5
  $region4: #{dblock_forward.2} parent=0 // pred_region
    _
  $region5: #{dblock_forward.2} parent=0 // pred_fallthru
    _
  // Predicated region
  $region6: #{dblock_forward.2} parent=0 // pred_check
    _
  $region7: #{dblock_forward.2} parent=0 // pred_check_branch
    %13 = sbr.rel (0) target = $region9
  $region8: #{dblock_forward.2} parent=0 // pred_region
    _
  $region9: #{dblock_forward.2} parent=0 // pred_fallthru
    _
  %v14 = vld [vmem:[%s0] sm:$0xf]
  %v15 = vlaneseq
  %v16 = vand.u32 %v15, 127
  %vm17 = vcmp.lt.s32.totalorder %v16, 0
  %v18 = vsub.s32 0, %v16
  %v19 = vsel %vm17, %v18, %v16
  %v20 = vshrl.u32 %v19, 4
  %v21 = vand.u32 %v19, 15
  %v22 = vsub.s32 0, %v21
  %v23 = vsel %vm17, %v22, %v21
  %vm24 = vcmp.ne.s32.totalorder %v23, 0
  %vm25 = vcmp.lt.s32.totalorder %v23, 0
  %vm26 = vmand %vm25, %vm24
  %v27 = vadd.s32 %v23, 16
  %v28 = vsel %vm26, %v27, %v23
  %vm29 = vcmp.ne.s32.totalorder %v28, 0
  %v30 = vsel %vm29, 1, 0
  %v31 = vcvt.s32.f32 %v30
  %vm32 = vcmp.ne.s32.totalorder %v28, 15
  %v33 = vsel %vm32, 1, 0
  %v34 = vcvt.s32.f32 %v33
  %v35 = vld [vmem:[%s1] sm:$0xff]
  %v36 = vld [vmem:[%s1 + $0x8] sm:$0xff]
  %v37 = vld [vmem:[%s1 + $0x10] sm:$0xff]
  %v38 = vld [vmem:[%s1 + $0x18] sm:$0xff]
  %v39 = vld [vmem:[%s1 + $0x20] sm:$0xff]
  %41 = vrot.lane.b32.xlu0 %v14, 1
  %v42 = vpop.permute.xlu0 %41
  %vm44 = vcmask 7168
  %v45 = vsel %vm44, 0.0, %v42
  %v46 = vmul.f32 %v45, %v31
  %47 = vrot.lane.b32.xlu0 %v14, 127
  %v48 = vpop.permute.xlu0 %47
  %vm50 = vcmask 252928
  %v51 = vsel %vm50, %v48, 0.0
  %v52 = vmul.f32 %v51, %v34
  %v53 = vrot.slane %v14, 4
  %vm55 = vcmask 1043456
  %v56 = vsel %vm55, %v46, %v53
  %v57 = vsel %vm55, %v52, 1.0
  %vm58 = vcmask 105472
  %v60 = vsel %vm58, %v35, 0
  %vm62 = vcmask 1044480
  %v64 = vsel %vm62, %v57, 0
  %66 = vmatprep.subr.mxu0 0.0
  %67 = vmatpush1.msra.mxu0 %v56
  %68 = vmatprep.subr.mxu0 0.0
  %69 = vmatpush1.msra.mxu0 %v64
  %70 = vmatprep.subr.mxu0 0.0
  %71 = vmatpush1.msra.mxu0 0.0
  %72 = vmatprep.subr.mxu0 0.0
  %73 = vmatpush1.msra.mxu0 0.0
  %74 = vmatprep.subr.mxu0 0.0
  %75 = vmatpush1.msra.mxu0 0.0
  %76 = vmatprep.subr.mxu0 0.0
  %77 = vmatpush1.msra.mxu0 0.0
  %78 = vmatprep.subr.mxu0 0.0
  %79 = vmatpush1.msra.mxu0 0.0
  %80 = vmatprep.subr.mxu0 0.0
  %81 = vmatpush1.msra.mxu0 0.0
  %82 = vmatprep.subr.mxu0 0.0
  %83 = vmatpush1.msra.mxu0 0.0
  %84 = vmatprep.subr.mxu0 0.0
  %85 = vmatpush1.msra.mxu0 0.0
  %86 = vmatprep.subr.mxu0 0.0
  %87 = vmatpush1.msra.mxu0 0.0
  %88 = vmatprep.subr.mxu0 0.0
  %89 = vmatpush1.msra.mxu0 0.0
  %90 = vmatprep.subr.mxu0 0.0
  %91 = vmatpush1.msra.mxu0 0.0
  %92 = vmatprep.subr.mxu0 0.0
  %93 = vmatpush1.msra.mxu0 0.0
  %94 = vmatprep.subr.mxu0 0.0
  %95 = vmatpush1.msra.mxu0 0.0
  %96 = vmatprep.subr.mxu0 0.0
  %97 = vmatpush1.msra.mxu0 0.0
  %98 = vmatprep.subr.mxu0 0.0
  %99 = vmatpush1.msra.mxu0 0.0
  %100 = vmatprep.subr.mxu0 0.0
  %101 = vmatpush1.msra.mxu0 0.0
  %102 = vmatprep.subr.mxu0 0.0
  %103 = vmatpush1.msra.mxu0 0.0
  %104 = vmatprep.subr.mxu0 0.0
  %105 = vmatpush1.msra.mxu0 0.0
  %106 = vmatprep.subr.mxu0 0.0
  %107 = vmatpush1.msra.mxu0 0.0
  %108 = vmatprep.subr.mxu0 0.0
  %109 = vmatpush1.msra.mxu0 0.0
  %110 = vmatprep.subr.mxu0 0.0
  %111 = vmatpush1.msra.mxu0 0.0
  %112 = vmatprep.subr.mxu0 0.0
  %113 = vmatpush1.msra.mxu0 0.0
  %114 = vmatprep.subr.mxu0 0.0
  %115 = vmatpush1.msra.mxu0 0.0
  %116 = vmatprep.subr.mxu0 0.0
  %117 = vmatpush1.msra.mxu0 0.0
  %118 = vmatprep.subr.mxu0 0.0
  %119 = vmatpush1.msra.mxu0 0.0
  %120 = vmatprep.subr.mxu0 0.0
  %121 = vmatpush1.msra.mxu0 0.0
  %122 = vmatprep.subr.mxu0 0.0
  %123 = vmatpush1.msra.mxu0 0.0
  %124 = vmatprep.subr.mxu0 0.0
  %125 = vmatpush1.msra.mxu0 0.0
  %126 = vmatprep.subr.mxu0 0.0
  %127 = vmatpush1.msra.mxu0 0.0
  %128 = vmatprep.subr.mxu0 0.0
  %129 = vmatpush1.msra.mxu0 0.0
  %130 = vmatprep.mubr.f32.mxu0 0.0
  %131 = vmatmul.mubr.f32.gmra.mrb[0].mxu0 %v60
  %v132 = vpop.f32.mrb[0].mxu0
  %v133 = vadd.f32 0.0, %v132
  %v134 = vpop.f32.mrb[0].mxu0
  %135 = vdwg.mxu0
  %vm136 = vcmp.gt.f32.partialorder %v133, 0.0
  %v137 = vmul.f32 %v133, 0.01
  %v138 = vsel %vm136, %v133, %v137
  %140 = vrot.lane.b32.xlu0 %v138, 1
  %v141 = vpop.permute.xlu0 %140
  %v143 = vsel %vm44, 0.0, %v141
  %v144 = vmul.f32 %v143, %v31
  %145 = vrot.lane.b32.xlu0 %v138, 127
  %v146 = vpop.permute.xlu0 %145
  %v148 = vsel %vm50, %v146, 0.0
  %v149 = vmul.f32 %v148, %v34
  %v151 = vsel %vm58, %v37, 0
  %153 = vmatprep.subr.mxu0 0.0
  %154 = vmatpush1.msra.mxu0 %v56
  %155 = vmatprep.subr.mxu0 0.0
  %156 = vmatpush1.msra.mxu0 %v64
  %157 = vmatprep.subr.mxu0 0.0
  %158 = vmatpush1.msra.mxu0 0.0
  %159 = vmatprep.subr.mxu0 0.0
  %160 = vmatpush1.msra.mxu0 0.0
  %161 = vmatprep.subr.mxu0 0.0
  %162 = vmatpush1.msra.mxu0 0.0
  %163 = vmatprep.subr.mxu0 0.0
  %164 = vmatpush1.msra.mxu0 0.0
  %165 = vmatprep.subr.mxu0 0.0
  %166 = vmatpush1.msra.mxu0 0.0
  %167 = vmatprep.subr.mxu0 0.0
  %168 = vmatpush1.msra.mxu0 0.0
  %169 = vmatprep.subr.mxu0 0.0
  %170 = vmatpush1.msra.mxu0 0.0
  %171 = vmatprep.subr.mxu0 0.0
  %172 = vmatpush1.msra.mxu0 0.0
  %173 = vmatprep.subr.mxu0 0.0
  %174 = vmatpush1.msra.mxu0 0.0
  %175 = vmatprep.subr.mxu0 0.0
  %176 = vmatpush1.msra.mxu0 0.0
  %177 = vmatprep.subr.mxu0 0.0
  %178 = vmatpush1.msra.mxu0 0.0
  %179 = vmatprep.subr.mxu0 0.0
  %180 = vmatpush1.msra.mxu0 0.0
  %181 = vmatprep.subr.mxu0 0.0
  %182 = vmatpush1.msra.mxu0 0.0
  %183 = vmatprep.subr.mxu0 0.0
  %184 = vmatpush1.msra.mxu0 0.0
  %185 = vmatprep.subr.mxu0 0.0
  %186 = vmatpush1.msra.mxu0 0.0
  %187 = vmatprep.subr.mxu0 0.0
  %188 = vmatpush1.msra.mxu0 0.0
  %189 = vmatprep.subr.mxu0 0.0
  %190 = vmatpush1.msra.mxu0 0.0
  %191 = vmatprep.subr.mxu0 0.0
  %192 = vmatpush1.msra.mxu0 0.0
  %193 = vmatprep.subr.mxu0 0.0
  %194 = vmatpush1.msra.mxu0 0.0
  %195 = vmatprep.subr.mxu0 0.0
  %196 = vmatpush1.msra.mxu0 0.0
  %197 = vmatprep.subr.mxu0 0.0
  %198 = vmatpush1.msra.mxu0 0.0
  %199 = vmatprep.subr.mxu0 0.0
  %200 = vmatpush1.msra.mxu0 0.0
  %201 = vmatprep.subr.mxu0 0.0
  %202 = vmatpush1.msra.mxu0 0.0
  %203 = vmatprep.subr.mxu0 0.0
  %204 = vmatpush1.msra.mxu0 0.0
  %205 = vmatprep.subr.mxu0 0.0
  %206 = vmatpush1.msra.mxu0 0.0
  %207 = vmatprep.subr.mxu0 0.0
  %208 = vmatpush1.msra.mxu0 0.0
  %209 = vmatprep.subr.mxu0 0.0
  %210 = vmatpush1.msra.mxu0 0.0
  %211 = vmatprep.subr.mxu0 0.0
  %212 = vmatpush1.msra.mxu0 0.0
  %213 = vmatprep.subr.mxu0 0.0
  %214 = vmatpush1.msra.mxu0 0.0
  %215 = vmatprep.subr.mxu0 0.0
  %216 = vmatpush1.msra.mxu0 0.0
  %217 = vmatprep.mubr.f32.mxu0 0.0
  %218 = vmatmul.mubr.f32.gmra.mrb[0].mxu0 %v151
  %v219 = vpop.f32.mrb[0].mxu0
  %v220 = vadd.f32 0.0, %v219
  %v221 = vpop.f32.mrb[0].mxu0
  %222 = vdwg.mxu0
  %vm223 = vcmask 203776
  %v225 = vsel %vm223, %v36, 0
  %vm227 = vcmask 1040384
  %v229 = vsel %vm227, 1.0, 0
  %231 = vmatprep.subr.mxu0 0.0
  %232 = vmatpush1.msra.mxu0 %v144
  %233 = vmatprep.subr.mxu0 0.0
  %234 = vmatpush1.msra.mxu0 %v138
  %235 = vmatprep.subr.mxu0 0.0
  %236 = vmatpush1.msra.mxu0 %v149
  %237 = vmatprep.subr.mxu0 0.0
  %238 = vmatpush1.msra.mxu0 %v229
  %239 = vmatprep.subr.mxu0 0.0
  %240 = vmatpush1.msra.mxu0 0.0
  %241 = vmatprep.subr.mxu0 0.0
  %242 = vmatpush1.msra.mxu0 0.0
  %243 = vmatprep.subr.mxu0 0.0
  %244 = vmatpush1.msra.mxu0 0.0
  %245 = vmatprep.subr.mxu0 0.0
  %246 = vmatpush1.msra.mxu0 0.0
  %247 = vmatprep.subr.mxu0 0.0
  %248 = vmatpush1.msra.mxu0 0.0
  %249 = vmatprep.subr.mxu0 0.0
  %250 = vmatpush1.msra.mxu0 0.0
  %251 = vmatprep.subr.mxu0 0.0
  %252 = vmatpush1.msra.mxu0 0.0
  %253 = vmatprep.subr.mxu0 0.0
  %254 = vmatpush1.msra.mxu0 0.0
  %255 = vmatprep.subr.mxu0 0.0
  %256 = vmatpush1.msra.mxu0 0.0
  %257 = vmatprep.subr.mxu0 0.0
  %258 = vmatpush1.msra.mxu0 0.0
  %259 = vmatprep.subr.mxu0 0.0
  %260 = vmatpush1.msra.mxu0 0.0
  %261 = vmatprep.subr.mxu0 0.0
  %262 = vmatpush1.msra.mxu0 0.0
  %263 = vmatprep.subr.mxu0 0.0
  %264 = vmatpush1.msra.mxu0 0.0
  %265 = vmatprep.subr.mxu0 0.0
  %266 = vmatpush1.msra.mxu0 0.0
  %267 = vmatprep.subr.mxu0 0.0
  %268 = vmatpush1.msra.mxu0 0.0
  %269 = vmatprep.subr.mxu0 0.0
  %270 = vmatpush1.msra.mxu0 0.0
  %271 = vmatprep.subr.mxu0 0.0
  %272 = vmatpush1.msra.mxu0 0.0
  %273 = vmatprep.subr.mxu0 0.0
  %274 = vmatpush1.msra.mxu0 0.0
  %275 = vmatprep.subr.mxu0 0.0
  %276 = vmatpush1.msra.mxu0 0.0
  %277 = vmatprep.subr.mxu0 0.0
  %278 = vmatpush1.msra.mxu0 0.0
  %279 = vmatprep.subr.mxu0 0.0
  %280 = vmatpush1.msra.mxu0 0.0
  %281 = vmatprep.subr.mxu0 0.0
  %282 = vmatpush1.msra.mxu0 0.0
  %283 = vmatprep.subr.mxu0 0.0
  %284 = vmatpush1.msra.mxu0 0.0
  %285 = vmatprep.subr.mxu0 0.0
  %286 = vmatpush1.msra.mxu0 0.0
  %287 = vmatprep.subr.mxu0 0.0
  %288 = vmatpush1.msra.mxu0 0.0
  %289 = vmatprep.subr.mxu0 0.0
  %290 = vmatpush1.msra.mxu0 0.0
  %291 = vmatprep.subr.mxu0 0.0
  %292 = vmatpush1.msra.mxu0 0.0
  %293 = vmatprep.subr.mxu0 0.0
  %294 = vmatpush1.msra.mxu0 0.0
  %295 = vmatprep.mubr.f32.mxu0 0.0
  %296 = vmatmul.mubr.f32.gmra.mrb[0].mxu0 %v225
  %v297 = vpop.f32.mrb[0].mxu0
  %v298 = vadd.f32 %v220, %v297
  %v299 = vpop.f32.mrb[0].mxu0
  %300 = vdwg.mxu0
  %vm301 = vcmp.gt.f32.partialorder %v298, 0.0
  %v302 = vmul.f32 %v298, 0.01
  %v303 = vsel %vm301, %v298, %v302
  %v304 = vsel %vm55, %v14, 1.0
  %vm305 = vcmask 39936
  %v307 = vsel %vm305, %v39, 0
  %v310 = vsel %vm62, %v304, 0
  %312 = vmatprep.subr.mxu0 0.0
  %313 = vmatpush1.msra.mxu0 %v310
  %314 = vmatprep.subr.mxu0 0.0
  %315 = vmatpush1.msra.mxu0 0.0
  %316 = vmatprep.subr.mxu0 0.0
  %317 = vmatpush1.msra.mxu0 0.0
  %318 = vmatprep.subr.mxu0 0.0
  %319 = vmatpush1.msra.mxu0 0.0
  %320 = vmatprep.subr.mxu0 0.0
  %321 = vmatpush1.msra.mxu0 0.0
  %322 = vmatprep.subr.mxu0 0.0
  %323 = vmatpush1.msra.mxu0 0.0
  %324 = vmatprep.subr.mxu0 0.0
  %325 = vmatpush1.msra.mxu0 0.0
  %326 = vmatprep.subr.mxu0 0.0
  %327 = vmatpush1.msra.mxu0 0.0
  %328 = vmatprep.subr.mxu0 0.0
  %329 = vmatpush1.msra.mxu0 0.0
  %330 = vmatprep.subr.mxu0 0.0
  %331 = vmatpush1.msra.mxu0 0.0
  %332 = vmatprep.subr.mxu0 0.0
  %333 = vmatpush1.msra.mxu0 0.0
  %334 = vmatprep.subr.mxu0 0.0
  %335 = vmatpush1.msra.mxu0 0.0
  %336 = vmatprep.subr.mxu0 0.0
  %337 = vmatpush1.msra.mxu0 0.0
  %338 = vmatprep.subr.mxu0 0.0
  %339 = vmatpush1.msra.mxu0 0.0
  %340 = vmatprep.subr.mxu0 0.0
  %341 = vmatpush1.msra.mxu0 0.0
  %342 = vmatprep.subr.mxu0 0.0
  %343 = vmatpush1.msra.mxu0 0.0
  %344 = vmatprep.subr.mxu0 0.0
  %345 = vmatpush1.msra.mxu0 0.0
  %346 = vmatprep.subr.mxu0 0.0
  %347 = vmatpush1.msra.mxu0 0.0
  %348 = vmatprep.subr.mxu0 0.0
  %349 = vmatpush1.msra.mxu0 0.0
  %350 = vmatprep.subr.mxu0 0.0
  %351 = vmatpush1.msra.mxu0 0.0
  %352 = vmatprep.subr.mxu0 0.0
  %353 = vmatpush1.msra.mxu0 0.0
  %354 = vmatprep.subr.mxu0 0.0
  %355 = vmatpush1.msra.mxu0 0.0
  %356 = vmatprep.subr.mxu0 0.0
  %357 = vmatpush1.msra.mxu0 0.0
  %358 = vmatprep.subr.mxu0 0.0
  %359 = vmatpush1.msra.mxu0 0.0
  %360 = vmatprep.subr.mxu0 0.0
  %361 = vmatpush1.msra.mxu0 0.0
  %362 = vmatprep.subr.mxu0 0.0
  %363 = vmatpush1.msra.mxu0 0.0
  %364 = vmatprep.subr.mxu0 0.0
  %365 = vmatpush1.msra.mxu0 0.0
  %366 = vmatprep.subr.mxu0 0.0
  %367 = vmatpush1.msra.mxu0 0.0
  %368 = vmatprep.subr.mxu0 0.0
  %369 = vmatpush1.msra.mxu0 0.0
  %370 = vmatprep.subr.mxu0 0.0
  %371 = vmatpush1.msra.mxu0 0.0
  %372 = vmatprep.subr.mxu0 0.0
  %373 = vmatpush1.msra.mxu0 0.0
  %374 = vmatprep.subr.mxu0 0.0
  %375 = vmatpush1.msra.mxu0 0.0
  %376 = vmatprep.mubr.f32.mxu0 0.0
  %377 = vmatmul.mubr.f32.gmra.mrb[0].mxu0 %v307
  %v378 = vpop.f32.mrb[0].mxu0
  %v379 = vadd.f32 0.0, %v378
  %v380 = vpop.f32.mrb[0].mxu0
  %381 = vdwg.mxu0
  %vm382 = vcmask 64512
  %v384 = vsel %vm382, %v38, 0
  %386 = vmatprep.subr.mxu0 0.0
  %387 = vmatpush1.msra.mxu0 %v303
  %388 = vmatprep.subr.mxu0 0.0
  %389 = vmatpush1.msra.mxu0 0.0
  %390 = vmatprep.subr.mxu0 0.0
  %391 = vmatpush1.msra.mxu0 0.0
  %392 = vmatprep.subr.mxu0 0.0
  %393 = vmatpush1.msra.mxu0 0.0
  %394 = vmatprep.subr.mxu0 0.0
  %395 = vmatpush1.msra.mxu0 0.0
  %396 = vmatprep.subr.mxu0 0.0
  %397 = vmatpush1.msra.mxu0 0.0
  %398 = vmatprep.subr.mxu0 0.0
  %399 = vmatpush1.msra.mxu0 0.0
  %400 = vmatprep.subr.mxu0 0.0
  %401 = vmatpush1.msra.mxu0 0.0
  %402 = vmatprep.subr.mxu0 0.0
  %403 = vmatpush1.msra.mxu0 0.0
  %404 = vmatprep.subr.mxu0 0.0
  %405 = vmatpush1.msra.mxu0 0.0
  %406 = vmatprep.subr.mxu0 0.0
  %407 = vmatpush1.msra.mxu0 0.0
  %408 = vmatprep.subr.mxu0 0.0
  %409 = vmatpush1.msra.mxu0 0.0
  %410 = vmatprep.subr.mxu0 0.0
  %411 = vmatpush1.msra.mxu0 0.0
  %412 = vmatprep.subr.mxu0 0.0
  %413 = vmatpush1.msra.mxu0 0.0
  %414 = vmatprep.subr.mxu0 0.0
  %415 = vmatpush1.msra.mxu0 0.0
  %416 = vmatprep.subr.mxu0 0.0
  %417 = vmatpush1.msra.mxu0 0.0
  %418 = vmatprep.subr.mxu0 0.0
  %419 = vmatpush1.msra.mxu0 0.0
  %420 = vmatprep.subr.mxu0 0.0
  %421 = vmatpush1.msra.mxu0 0.0
  %422 = vmatprep.subr.mxu0 0.0
  %423 = vmatpush1.msra.mxu0 0.0
  %424 = vmatprep.subr.mxu0 0.0
  %425 = vmatpush1.msra.mxu0 0.0
  %426 = vmatprep.subr.mxu0 0.0
  %427 = vmatpush1.msra.mxu0 0.0
  %428 = vmatprep.subr.mxu0 0.0
  %429 = vmatpush1.msra.mxu0 0.0
  %430 = vmatprep.subr.mxu0 0.0
  %431 = vmatpush1.msra.mxu0 0.0
  %432 = vmatprep.subr.mxu0 0.0
  %433 = vmatpush1.msra.mxu0 0.0
  %434 = vmatprep.subr.mxu0 0.0
  %435 = vmatpush1.msra.mxu0 0.0
  %436 = vmatprep.subr.mxu0 0.0
  %437 = vmatpush1.msra.mxu0 0.0
  %438 = vmatprep.subr.mxu0 0.0
  %439 = vmatpush1.msra.mxu0 0.0
  %440 = vmatprep.subr.mxu0 0.0
  %441 = vmatpush1.msra.mxu0 0.0
  %442 = vmatprep.subr.mxu0 0.0
  %443 = vmatpush1.msra.mxu0 0.0
  %444 = vmatprep.subr.mxu0 0.0
  %445 = vmatpush1.msra.mxu0 0.0
  %446 = vmatprep.subr.mxu0 0.0
  %447 = vmatpush1.msra.mxu0 0.0
  %448 = vmatprep.subr.mxu0 0.0
  %449 = vmatpush1.msra.mxu0 0.0
  %450 = vmatprep.mubr.f32.mxu0 0.0
  %451 = vmatmul.mubr.f32.gmra.mrb[0].mxu0 %v384
  %v452 = vpop.f32.mrb[0].mxu0
  %v453 = vadd.f32 %v379, %v452
  %v454 = vpop.f32.mrb[0].mxu0
  %455 = vdwg.mxu0
  %vm456 = vcmp.gt.f32.partialorder %v453, 0.0
  %v457 = vmul.f32 %v453, 0.01
  %v458 = vsel %vm456, %v453, %v457
  %vm459 = vcmask 261120
  %460 = vst.msk [vmem:[%s2] sm:$0xff] %vm459, %v458
  %v461 = vsel %vm459, %v458, 0.0
  %462 = vadd.xlane.f32.xlu0 %v461
  %v463 = vpop.xlane.xlu0 %462
  %464 = vst.msk [vmem:[%s3] sm:$0xff] %vm44, %v463
  %v465 = vmul.f32 %v458, %v458
  %v466 = vsel %vm459, %v465, 0.0
  %467 = vadd.xlane.f32.xlu0 %v466
  %v468 = vpop.xlane.xlu0 %467
  %469 = vst.msk [vmem:[%s4] sm:$0xff] %vm44, %v468
  // Predicated region
  $region10: #{dblock_forward.2} parent=0 // pred_check
    _
  $region11: #{dblock_forward.2} parent=0 // pred_check_branch
    %471 = sbr.rel (0) target = $region13
  $region12: #{dblock_forward.2} parent=0 // pred_region
    _
  $region13: #{dblock_forward.2} parent=0 // pred_fallthru
    _
  // Predicated region
  $region14: #{dblock_forward.2} parent=0 // pred_check
    _
  $region15: #{dblock_forward.2} parent=0 // pred_check_branch
    %473 = sbr.rel (0) target = $region17
  $region16: #{dblock_forward.2} parent=0 // pred_region
    _
  $region17: #{dblock_forward.2} parent=0 // pred_fallthru
    _
  // Predicated region
  $region18: #{dblock_forward.2} parent=0 // pred_check
    _
  $region19: #{dblock_forward.2} parent=0 // pred_check_branch
    %475 = sbr.rel (0) target = $region21
  $region20: #{dblock_forward.2} parent=0 // pred_region
    _
  $region21: #{dblock_forward.2} parent=0 // pred_fallthru
    _
  // Predicated region
  $region22: #{dblock_forward.2} parent=0 // pred_check
    _
  $region23: #{dblock_forward.2} parent=0 // pred_check_branch
    %477 = sbr.rel (0) target = $region25
  $region24: #{dblock_forward.2} parent=0 // pred_region
    _
  $region25: #{dblock_forward.2} parent=0 // pred_fallthru
    _
  // Predicated region
  $region26: #{dblock_forward.2} parent=0 // pred_check
    _
  $region27: #{dblock_forward.2} parent=0 // pred_check_branch
    %479 = sbr.rel (0) target = $region29
  $region28: #{dblock_forward.2} parent=0 // pred_region
    _
  $region29: #{dblock_forward.2} parent=0 // pred_fallthru
    _
  // Predicated region
  $region30: #{dblock_forward.2} parent=0 // pred_check
    _
  $region31: #{dblock_forward.2} parent=0 // pred_check_branch
    %481 = sbr.rel (0) target = $region33
  $region32: #{dblock_forward.2} parent=0 // pred_region
    _
  $region33: #{dblock_forward.2} parent=0 // pred_fallthru
    _

</llo_original>
